<compile_context>
chip_gen: v7x
topology: tpu7x:2x2x1
jax: 0.10.0
libtpu: 0.0.40
codegen_flags: <defaults>
</compile_context>

<pallas_src>
import functools

import jax
import jax.numpy as jnp
from jax.experimental import pallas as pl
from jax.experimental.pallas import tpu as pltpu


# ---------------------------------------------------------------------------
# Kernels
# ---------------------------------------------------------------------------

def _se_fused_kernel(x_ref, w1_ref, w2_ref, o_ref, *, inv_hw, channels_last):
    """Fused pool -> FC -> ReLU -> FC -> sigmoid -> rescale for one block.

    Block layout is (TB, C, HW) when channels_last=False, (TB, HW, C) otherwise.
    """
    pool_axis = 1 if channels_last else 2

    # AdaptiveAvgPool2d(1): f32-accumulated sum taken straight from the ref
    # (the block is NOT bound once and kept live across the FC chain; it is
    #  re-read below for the rescale so Mosaic can stream the loads).
    y = jnp.sum(x_ref[...], axis=pool_axis, dtype=jnp.float32) * inv_hw   # (TB, C)

    # fc: Linear(C, r, bias=False) -> ReLU -> Linear(r, C, bias=False) -> Sigmoid
    # Tiny GEMVs on the otherwise-idle MXU, f32 accumulation.
    w1 = w1_ref[...].astype(jnp.float32)
    w2 = w2_ref[...].astype(jnp.float32)
    h = jnp.maximum(jnp.dot(y, w1, preferred_element_type=jnp.float32), 0.0)
    z = jnp.dot(h, w2, preferred_element_type=jnp.float32)
    s = jax.nn.sigmoid(z)                                                 # (TB, C) f32

    gate = s[:, None, :] if channels_last else s[:, :, None]

    # x * y.expand_as(x): re-read the block, multiply in f32, cast on store.
    o_ref[...] = (x_ref[...].astype(jnp.float32) * gate).astype(o_ref.dtype)


def _se_pool_gate_kernel(x_ref, w1_ref, w2_ref, gate_ref, acc_ref, *, inv_hw):
    """Two-phase fallback, phase 1: accumulate the pooled sum over HW tiles,
    run the FC bottleneck + sigmoid on the last tile.

    x_ref:    (1, C, THW) block
    gate_ref: (1, C, 1)   f32 output, resident across the HW ("arbitrary") axis
    acc_ref:  (1, C)      f32 scratch accumulator
    """
    h = pl.program_id(1)

    @pl.when(h == 0)
    def _init():
        acc_ref[...] = jnp.zeros_like(acc_ref)

    acc_ref[...] += jnp.sum(x_ref[...], axis=-1, dtype=jnp.float32)       # (1, C)

    @pl.when(h == pl.num_programs(1) - 1)
    def _finalize():
        y = acc_ref[...] * inv_hw                                         # (1, C)
        w1 = w1_ref[...].astype(jnp.float32)
        w2 = w2_ref[...].astype(jnp.float32)
        hdn = jnp.maximum(jnp.dot(y, w1, preferred_element_type=jnp.float32), 0.0)
        z = jnp.dot(hdn, w2, preferred_element_type=jnp.float32)
        gate_ref[...] = jax.nn.sigmoid(z)[:, :, None]                     # (1, C, 1)


def _se_scale_kernel(gate_ref, x_ref, o_ref):
    """Two-phase fallback, phase 2: rescale one (1, C, THW) tile by the gate."""
    s = gate_ref[...]                                                     # (1, C, 1) f32
    o_ref[...] = (x_ref[...].astype(jnp.float32) * s).astype(o_ref.dtype)


# ---------------------------------------------------------------------------
# Sizing helpers (generation-aware)
# ---------------------------------------------------------------------------

def _physical_vmem_bytes():
    """Per-TensorCore VMEM capacity; conservative (v7x, 64 MiB) default."""
    try:
        cap = getattr(pltpu.get_tpu_info(), "vmem_capacity_bytes", None)
        if cap:
            return int(cap)
    except Exception:
        pass
    return 64 << 20


def _choose_tb(batch, per_batch_bytes, budget_bytes):
    """Largest batch tile dividing `batch` whose 4 double-buffered blocks
    (2 in + 2 out) fit `budget_bytes`, keeping >= 2 grid steps when batch >= 2
    so the 'parallel' axis can shard across v7x's two TensorCores.
    Falls back to TB=1 (the caller only uses the fused path when a TB=1 block
    fits its vmem_limit)."""
    best = 1
    for tb in range(1, batch + 1):
        if batch % tb:
            continue
        if 4 * tb * per_batch_bytes > budget_bytes:
            continue
        if batch >= 2 and batch // tb < 2:
            continue
        best = tb
    return best


def _choose_thw(hw, bytes_per_hw_col, per_block_budget):
    """Largest proper divisor of `hw` that is a multiple of 128 (lane-aligned,
    unmasked vld/vst) whose (C, THW) block fits `per_block_budget`."""
    best = None
    for t in range(128, hw, 128):
        if hw % t == 0 and t * bytes_per_hw_col <= per_block_budget:
            best = t
    return best


# ---------------------------------------------------------------------------
# Wrappers
# ---------------------------------------------------------------------------

def _se_fused(x, w1, w2, per_batch_bytes, w_bytes, vmem_limit_cap):
    B, C, H, W = x.shape
    r = w1.shape[1]
    HW = H * W
    itemsize = x.dtype.itemsize

    # Lane-axis selection: keep H*W on lanes unless it is narrow (< 128) while
    # C is wide -- then channels-last keeps full-lane (unmasked) stores.
    channels_last = (HW < 128) and (C >= 128)
    if channels_last:
        x2 = jnp.transpose(x.reshape(B, C, HW), (0, 2, 1))   # (B, HW, C)
        block_shape = (None, HW, C)
    else:
        x2 = x.reshape(B, C, HW)                             # (B, C, HW)
        block_shape = (None, C, HW)

    # ~16 MiB of double-buffered blocks already sits at the HBM roofline;
    # smaller tiles -> more grid steps -> better v7x megacore sharding.
    tile_budget = 16 << 20
    TB = _choose_tb(B, per_batch_bytes, tile_budget)
    grid = (B // TB,)
    # NOTE: with B == 1 there is a single 'parallel' step, so one v7x
    # TensorCore idles on this (small-block) fused path; the two-phase path
    # below parallelizes its scale phase over HW tiles instead.

    blk = (TB,) + block_shape[1:]
    needed = 4 * TB * per_batch_bytes + 2 * w_bytes + (2 << 20)
    vmem_limit = int(min(vmem_limit_cap, max(16 << 20, needed)))

    kernel = functools.partial(_se_fused_kernel, inv_hw=float(1.0 / HW),
                               channels_last=channels_last)

    cost = pl.CostEstimate(
        flops=int(2 * B * C * HW + 4 * B * C * r),
        transcendentals=int(B * C),
        bytes_accessed=int(2 * B * C * HW * itemsize + w_bytes),
    )

    out2 = pl.pallas_call(
        kernel,
        out_shape=jax.ShapeDtypeStruct(x2.shape, x.dtype),
        grid_spec=pltpu.PrefetchScalarGridSpec(
            num_scalar_prefetch=0,
            grid=grid,
            in_specs=[
                pl.BlockSpec(blk, lambda b: (b, 0, 0)),
                # Constant index maps: the resident weight block is reused
                # across grid steps (no re-fetch); buffers are only C*r elems.
                pl.BlockSpec((C, r), lambda b: (0, 0)),
                pl.BlockSpec((r, C), lambda b: (0, 0)),
            ],
            out_specs=pl.BlockSpec(blk, lambda b: (b, 0, 0)),
        ),
        compiler_params=pltpu.CompilerParams(
            dimension_semantics=("parallel",),
            vmem_limit_bytes=vmem_limit,
        ),
        cost_estimate=cost,
    )(x2, w1, w2)

    if channels_last:
        return jnp.transpose(out2, (0, 2, 1)).reshape(B, C, H, W)
    return out2.reshape(B, C, H, W)


def _se_two_phase(x, w1, w2, thw, w_bytes, vmem_limit_cap):
    """Pool+gate pass then scale pass (1.5x HBM traffic, bounded VMEM)."""
    B, C, H, W = x.shape
    r = w1.shape[1]
    HW = H * W
    itemsize = x.dtype.itemsize
    n_hw = HW // thw
    x2 = x.reshape(B, C, HW)

    block_bytes = C * thw * itemsize
    vmem_limit = int(min(vmem_limit_cap,
                         max(16 << 20, 4 * block_bytes + 2 * w_bytes + (4 << 20))))
    inv_hw = float(1.0 / HW)

    # Phase 1: pooled mean + FC bottleneck + sigmoid -> per-(batch, channel) gate.
    gate = pl.pallas_call(
        functools.partial(_se_pool_gate_kernel, inv_hw=inv_hw),
        out_shape=jax.ShapeDtypeStruct((B, C, 1), jnp.float32),
        grid_spec=pltpu.PrefetchScalarGridSpec(
            num_scalar_prefetch=0,
            grid=(B, n_hw),
            in_specs=[
                pl.BlockSpec((1, C, thw), lambda b, h: (b, 0, h)),
                pl.BlockSpec((C, r), lambda b, h: (0, 0)),
                pl.BlockSpec((r, C), lambda b, h: (0, 0)),
            ],
            out_specs=pl.BlockSpec((1, C, 1), lambda b, h: (b, 0, 0)),
            scratch_shapes=[pltpu.VMEM((1, C), jnp.float32)],
        ),
        compiler_params=pltpu.CompilerParams(
            dimension_semantics=("parallel", "arbitrary"),
            vmem_limit_bytes=vmem_limit,
        ),
        cost_estimate=pl.CostEstimate(
            flops=int(B * C * HW + 4 * B * C * r),
            transcendentals=int(B * C),
            bytes_accessed=int(B * C * HW * itemsize + w_bytes + B * C * 4),
        ),
    )(x2, w1, w2)

    # Phase 2: stream x again and rescale each (1, C, THW) tile by its gate.
    out2 = pl.pallas_call(
        _se_scale_kernel,
        out_shape=jax.ShapeDtypeStruct((B, C, HW), x.dtype),
        grid_spec=pltpu.PrefetchScalarGridSpec(
            num_scalar_prefetch=0,
            grid=(B, n_hw),
            in_specs=[
                pl.BlockSpec((1, C, 1), lambda b, h: (b, 0, 0)),
                pl.BlockSpec((1, C, thw), lambda b, h: (b, 0, h)),
            ],
            out_specs=pl.BlockSpec((1, C, thw), lambda b, h: (b, 0, h)),
        ),
        compiler_params=pltpu.CompilerParams(
            dimension_semantics=("parallel", "parallel"),
            vmem_limit_bytes=vmem_limit,
        ),
        cost_estimate=pl.CostEstimate(
            flops=int(B * C * HW),
            transcendentals=0,
            bytes_accessed=int(2 * B * C * HW * itemsize + B * C * 4),
        ),
    )(gate, x2)

    return out2.reshape(B, C, H, W)


def se_layer(x, w1, w2, *, force_two_phase=False):
    """SELayer forward. x: (B, C, H, W); w1: (C, r); w2: (r, C).

    w1/w2 are the torch Linear weights pre-transposed (fc[0].weight.T,
    fc[2].weight.T) so the bottleneck is y @ w1, relu, @ w2, sigmoid.
    """
    B, C, H, W = x.shape
    Cw, r = w1.shape
    assert Cw == C and w2.shape == (r, C)

    HW = H * W
    itemsize = x.dtype.itemsize
    per_batch_bytes = C * HW * itemsize
    w_bytes = w1.size * w1.dtype.itemsize + w2.size * w2.dtype.itemsize

    vmem_cap = _physical_vmem_bytes()
    # ~75% of physical VMEM: 48 MiB on v7x (64 MiB/TC), 96 MiB on v5e/v6e (128 MiB).
    vmem_limit_cap = (vmem_cap * 3) // 4

    fused_needed = 4 * per_batch_bytes + 2 * w_bytes + (2 << 20)
    use_fused = (not force_two_phase) and fused_needed <= vmem_limit_cap

    thw = None
    if not use_fused:
        # Two-phase fallback: lane-aligned HW tiles of <= ~4 MiB per block.
        thw = _choose_thw(HW, C * itemsize, per_block_budget=4 << 20)
        if thw is None:
            # TODO(synk): no lane-aligned (multiple-of-128) tiling of H*W exists
            # for this shape; fall back to the fused path at the maximum
            # vmem_limit as a best effort (may spill on v7x for huge C*H*W).
            use_fused = True

    if use_fused:
        return _se_fused(x, w1, w2, per_batch_bytes, w_bytes, vmem_limit_cap)
    return _se_two_phase(x, w1, w2, thw, w_bytes, vmem_limit_cap)


def se_layer_ref(x, w1, w2):
    """Pure-JAX reference mirroring the PyTorch forward."""
    y = jnp.mean(x.astype(jnp.float32), axis=(2, 3))                  # (B, C)
    h = jnp.maximum(y @ w1.astype(jnp.float32), 0.0)                  # (B, r)
    s = jax.nn.sigmoid(h @ w2.astype(jnp.float32))                    # (B, C)
    return (x.astype(jnp.float32) * s[:, :, None, None]).astype(x.dtype)


# ---------------------------------------------------------------------------
# Self-test
# ---------------------------------------------------------------------------

if __name__ == "__main__":
    key = jax.random.PRNGKey(0)
    k = jax.random.split(key, 9)

    def _check(x, w1, w2, atol, rtol, **kw):
        out = jax.block_until_ready(se_layer(x, w1, w2, **kw))
        ref = se_layer_ref(x, w1, w2)
        assert out.shape == x.shape and out.dtype == x.dtype
        ok = jnp.allclose(out.astype(jnp.float32), ref.astype(jnp.float32),
                          atol=atol, rtol=rtol)
        assert bool(ok), "mismatch vs reference"

    # 1) Module-default shapes: batch=2, channels=4, spatial=16, reduction=2.
    x = jax.random.normal(k[0], (2, 4, 16, 16), dtype=jnp.float32)
    w1 = jax.random.normal(k[1], (4, 2), dtype=jnp.float32) * 0.5     # Linear(C, r).weight.T
    w2 = jax.random.normal(k[2], (2, 4), dtype=jnp.float32) * 0.5     # Linear(r, C).weight.T
    _check(x, w1, w2, atol=1e-5, rtol=1e-5)

    # 2) Channels-last fused path (H*W < 128, C >= 128): late-stage 7x7 map.
    xc = jax.random.normal(k[3], (2, 128, 7, 7), dtype=jnp.float32)
    w1c = jax.random.normal(k[4], (128, 8), dtype=jnp.float32) * 0.1
    w2c = jax.random.normal(k[5], (8, 128), dtype=jnp.float32) * 0.1
    _check(xc, w1c, w2c, atol=2e-3, rtol=2e-3)

    # 3) Two-phase fallback (forced here; auto-triggers for large C*H*W on v7x).
    xt = jax.random.normal(k[6], (2, 8, 16, 16), dtype=jnp.float32)
    w1t = jax.random.normal(k[7], (8, 2), dtype=jnp.float32) * 0.5
    w2t = jax.random.normal(k[8], (2, 8), dtype=jnp.float32) * 0.5
    _check(xt, w1t, w2t, atol=2e-3, rtol=2e-3, force_two_phase=True)

    # 4) bf16 input: gate computed in f32, rescale in f32, cast on store.
    _check(x.astype(jnp.bfloat16), w1, w2, atol=5e-2, rtol=5e-2)

    print("KERNEL_OK")
</pallas_src>

<mosaic_0001>
module attributes {stable_mosaic.version = 11 : i64} {
  func.func @_se_fused_kernel(%arg0: i32, %arg1: memref<1x4x256xf32, #tpu.memory_space<vmem>>, %arg2: memref<4x2xf32, #tpu.memory_space<vmem>>, %arg3: memref<2x4xf32, #tpu.memory_space<vmem>>, %arg4: memref<1x4x256xf32, #tpu.memory_space<vmem>>) attributes {dimension_semantics = [#tpu.dimension_semantics<parallel>], iteration_bounds = array<i64: 2>, scalar_prefetch = 0 : i64, scratch_operands = 0 : i64, tpu.core_type = #tpu.core_type<tc>, window_params = [{transform_indices = @transform_0, window_bounds = array<i64: 1, 4, 256>}, {pipeline_mode = #tpu.pipeline_mode<synchronous>, transform_indices = @transform_1, window_bounds = array<i64: 4, 2>}, {pipeline_mode = #tpu.pipeline_mode<synchronous>, transform_indices = @transform_2, window_bounds = array<i64: 2, 4>}, {transform_indices = @transform_3, window_bounds = array<i64: 1, 4, 256>}]} {
    %c0 = arith.constant 0 : index
    %c0_0 = arith.constant 0 : index
    %c0_1 = arith.constant 0 : index
    %0 = vector.load %arg1[%c0, %c0_0, %c0_1] : memref<1x4x256xf32, #tpu.memory_space<vmem>>, vector<1x4x256xf32>
    %cst = arith.constant dense<0.000000e+00> : vector<1x4xf32>
    %1 = vector.multi_reduction <add>, %0, %cst [2] : vector<1x4x256xf32> to vector<1x4xf32>
    %cst_2 = arith.constant 3.906250e-03 : f32
    %2 = vector.broadcast %cst_2 : f32 to vector<1x4xf32>
    %3 = arith.mulf %1, %2 : vector<1x4xf32>
    %c0_3 = arith.constant 0 : index
    %c0_4 = arith.constant 0 : index
    %4 = vector.load %arg2[%c0_3, %c0_4] : memref<4x2xf32, #tpu.memory_space<vmem>>, vector<4x2xf32>
    %c0_5 = arith.constant 0 : index
    %c0_6 = arith.constant 0 : index
    %5 = vector.load %arg3[%c0_5, %c0_6] : memref<2x4xf32, #tpu.memory_space<vmem>>, vector<2x4xf32>
    %cst_7 = arith.constant dense<0.000000e+00> : vector<1x2xf32>
    %6 = tpu.matmul %3, %4, %cst_7 {dimension_numbers = #tpu.dot_dimension_numbers<[1], [0], [0], [1], [0, 0, 1, 1], [], []>} : vector<1x4xf32>, vector<4x2xf32>, vector<1x2xf32> -> vector<1x2xf32>
    %cst_8 = arith.constant 0.000000e+00 : f32
    %7 = vector.broadcast %cst_8 : f32 to vector<1x2xf32>
    %8 = arith.maximumf %6, %7 : vector<1x2xf32>
    %cst_9 = arith.constant dense<0.000000e+00> : vector<1x4xf32>
    %9 = tpu.matmul %8, %5, %cst_9 {dimension_numbers = #tpu.dot_dimension_numbers<[1], [0], [0], [1], [0, 0, 1, 1], [], []>} : vector<1x2xf32>, vector<2x4xf32>, vector<1x4xf32> -> vector<1x4xf32>
    %10 = arith.negf %9 : vector<1x4xf32>
    %11 = math.exp %10 : vector<1x4xf32>
    %cst_10 = arith.constant 1.000000e+00 : f32
    %12 = vector.broadcast %cst_10 : f32 to vector<1x4xf32>
    %13 = arith.addf %12, %11 : vector<1x4xf32>
    %14 = arith.divf %12, %13 : vector<1x4xf32>
    %15 = vector.shape_cast %14 : vector<1x4xf32> to vector<1x4x1xf32>
    %c0_11 = arith.constant 0 : index
    %c0_12 = arith.constant 0 : index
    %c0_13 = arith.constant 0 : index
    %16 = vector.load %arg1[%c0_11, %c0_12, %c0_13] : memref<1x4x256xf32, #tpu.memory_space<vmem>>, vector<1x4x256xf32>
    %17 = vector.broadcast %15 : vector<1x4x1xf32> to vector<1x4x256xf32>
    %18 = arith.mulf %16, %17 : vector<1x4x256xf32>
    %c0_14 = arith.constant 0 : index
    %c0_15 = arith.constant 0 : index
    %c0_16 = arith.constant 0 : index
    %19 = vector.load %arg4[%c0_14, %c0_15, %c0_16] : memref<1x4x256xf32, #tpu.memory_space<vmem>>, vector<1x4x256xf32>
    tpu.vector_store %arg4[%c0_14, %c0_15, %c0_16], %18 {strides = array<i32>} : memref<1x4x256xf32, #tpu.memory_space<vmem>>, vector<1x4x256xf32>,
    return
  }
  func.func @transform_0(%arg0: i32) -> (i32, i32, i32) {
    %c0_i32 = arith.constant 0 : i32
    %c0_i32_0 = arith.constant 0 : i32
    %c0_i32_1 = arith.constant 0 : i32
    return %arg0, %c0_i32, %c0_i32_0 : i32, i32, i32
  }
  func.func @transform_1(%arg0: i32) -> (i32, i32) {
    %c0_i32 = arith.constant 0 : i32
    %c0_i32_0 = arith.constant 0 : i32
    %c0_i32_1 = arith.constant 0 : i32
    return %c0_i32, %c0_i32_0 : i32, i32
  }
  func.func @transform_2(%arg0: i32) -> (i32, i32) {
    %c0_i32 = arith.constant 0 : i32
    %c0_i32_0 = arith.constant 0 : i32
    %c0_i32_1 = arith.constant 0 : i32
    return %c0_i32, %c0_i32_0 : i32, i32
  }
  func.func @transform_3(%arg0: i32) -> (i32, i32, i32) {
    %c0_i32 = arith.constant 0 : i32
    %c0_i32_0 = arith.constant 0 : i32
    %c0_i32_1 = arith.constant 0 : i32
    return %arg0, %c0_i32, %c0_i32_0 : i32, i32, i32
  }
}

</mosaic_0001>

<llo_original>
// kernel: tpu_custom_call.1
$region0: #{tpu_custom_call.1}
  #allocation0 [shape = 'u32[]', space=smem, size = 0x4, offset = 0x4, fixed_abs, tag = 'smem constant byte address 0x4 - core index']
  #allocation1 [shape = 'u32[144,128]{1,0:T(1,128)}', space=vmem, size = 0x12000, scoped, tag = 'internal scratch']
  %s0 = inlined_call_operand.hbm [shape: f32[2,4,256], index: 0, kind: input, shape index: {}]
  %s1 = inlined_call_operand.vmem [shape: f32[4,2], index: 1, kind: input, shape index: {}]
  %s2 = inlined_call_operand.vmem [shape: f32[2,4], index: 2, kind: input, shape index: {}]
  %s3 = inlined_call_operand.hbm [shape: f32[2,4,256], index: 3, kind: output, shape index: {}]
  %s4 = sld [smem:[#allocation0]]
  $region49: #{tpu_custom_call.1} parent=0
    _
  %s6 = ssub.s32 1, %s4
  %s7 = scalar_select 0, %s6, %s4
  $region1: #{tpu_custom_call.1} parent=0
    #allocation2 [shape = 'u8[8192]{0}', space=vmem, size = 0x2000, scoped, tag = 'input window, operand 0']
    #allocation3 [shape = 's32[2]{0}', space=sflag, size = 0x8, scoped, tag = 'scoped memory for tpu_custom_call.1']
    #allocation4 [shape = 's32[2]{0}', space=sflag, size = 0x8, scoped, tag = 'scoped memory for tpu_custom_call.1']
    #allocation5 [shape = 'u8[8192]{0}', space=vmem, size = 0x2000, scoped, tag = 'output window, operand 0']
    %8 = vsyncpa [#allocation3], 0
    %s9 = scalar_lea.sflag [#allocation3], 1
    %10 = vsyncpa %s9, 0
    %11 = vsyncpa [#allocation4], 0
    %s12 = scalar_lea.sflag [#allocation4], 1
    %13 = vsyncpa %s12, 0
    loop: start=0, step=1, limit=4
    $region2: #{tpu_custom_call.1} parent=1 // loop_pre_header
      _
    $region3: #{tpu_custom_call.1} parent=1 // loop_header
      %s15 = sphi 0, %s19
      %p16 = scmp.ge.s32.totalorder %s15, 4
      %s25 = sphi 0, %s27
      %s28 = sphi 0, %s25
      %s29 = sphi 0, %s28
      %s45 = sphi 0, %s29
      %s49 = sphi 0, %s49
      %s51 = sphi 0, %s49
      %s52 = sphi 0, %s51
      %s66 = sphi 0, %s52
      %s70 = sphi 0, %s70
      %s72 = sphi 0, %s70
      %s73 = sphi 0, %s72
      %s87 = sphi 0, %s73
      %s93 = sphi 0, %s95
      %s96 = sphi 0, %s93
      %s97 = sphi 0, %s96
      %s113 = sphi 0, %s97
    $region4: #{tpu_custom_call.1} parent=1 // loop_header_branch
      %18 = sbr.rel (%p16) target = $region8
    $region5: #{tpu_custom_call.1} parent=1 // loop_body
      %s20 = ssub.s32 %s15, 1
      %s21 = ssub.s32 %s15, 2
      %s22 = sadd.s32 %s15, 1
      %s23 = ssub.s32 %s15, %s22
      %p24 = scmp.eq.s32.totalorder %s23, 0
      %s26 = sadd.s32 %s25, 1
      %s27 = scalar_select %p24, %s25, %s26
      %p30 = pneg %p24
      %p31 = scmp.eq.s32.totalorder %s15, 1
      %p32 = por %p30, %p31
      %p33 = scmp.ne.s32.totalorder %s25, %s28
      %p34 = scmp.eq.s32.totalorder %s15, 0
      %p35 = por %p33, %p34
      %p36 = scmp.ne.s32.totalorder %s25, %s28
      %p37 = scmp.eq.s32.totalorder %s20, 1
      %p38 = por %p36, %p37
      %p39 = scmp.ne.s32.totalorder %s28, %s29
      %p40 = scmp.eq.s32.totalorder %s20, 0
      %p41 = por %p39, %p40
      %p42 = scmp.ne.s32.totalorder %s28, %s29
      %p43 = scmp.eq.s32.totalorder %s21, 1
      %p44 = por %p42, %p43
      %p46 = scmp.ne.s32.totalorder %s29, %s45
      %p47 = scmp.eq.s32.totalorder %s21, 0
      %p48 = por %p46, %p47
      %s50 = sadd.s32 %s49, 1
      %p53 = scmp.eq.s32.totalorder %s15, 1
      %p54 = scmp.ne.s32.totalorder %s49, %s51
      %p55 = scmp.eq.s32.totalorder %s15, 0
      %p56 = por %p54, %p55
      %p57 = scmp.ne.s32.totalorder %s49, %s51
      %p58 = scmp.eq.s32.totalorder %s20, 1
      %p59 = por %p57, %p58
      %p60 = scmp.ne.s32.totalorder %s51, %s52
      %p61 = scmp.eq.s32.totalorder %s20, 0
      %p62 = por %p60, %p61
      %p63 = scmp.ne.s32.totalorder %s51, %s52
      %p64 = scmp.eq.s32.totalorder %s21, 1
      %p65 = por %p63, %p64
      %p67 = scmp.ne.s32.totalorder %s52, %s66
      %p68 = scmp.eq.s32.totalorder %s21, 0
      %p69 = por %p67, %p68
      %s71 = sadd.s32 %s70, 1
      %p74 = scmp.eq.s32.totalorder %s15, 1
      %p75 = scmp.ne.s32.totalorder %s70, %s72
      %p76 = scmp.eq.s32.totalorder %s15, 0
      %p77 = por %p75, %p76
      %p78 = scmp.ne.s32.totalorder %s70, %s72
      %p79 = scmp.eq.s32.totalorder %s20, 1
      %p80 = por %p78, %p79
      %p81 = scmp.ne.s32.totalorder %s72, %s73
      %p82 = scmp.eq.s32.totalorder %s20, 0
      %p83 = por %p81, %p82
      %p84 = scmp.ne.s32.totalorder %s72, %s73
      %p85 = scmp.eq.s32.totalorder %s21, 1
      %p86 = por %p84, %p85
      %p88 = scmp.ne.s32.totalorder %s73, %s87
      %p89 = scmp.eq.s32.totalorder %s21, 0
      %p90 = por %p88, %p89
      %s91 = ssub.s32 %s15, %s22
      %p92 = scmp.eq.s32.totalorder %s91, 0
      %s94 = sadd.s32 %s93, 1
      %s95 = scalar_select %p92, %s93, %s94
      %p98 = pneg %p92
      %p99 = scmp.eq.s32.totalorder %s15, 1
      %p100 = por %p98, %p99
      %p101 = scmp.ne.s32.totalorder %s93, %s96
      %p102 = scmp.eq.s32.totalorder %s15, 0
      %p103 = por %p101, %p102
      %p104 = scmp.ne.s32.totalorder %s93, %s96
      %p105 = scmp.eq.s32.totalorder %s20, 1
      %p106 = por %p104, %p105
      %p107 = scmp.ne.s32.totalorder %s96, %s97
      %p108 = scmp.eq.s32.totalorder %s20, 0
      %p109 = por %p107, %p108
      %p110 = scmp.ne.s32.totalorder %s96, %s97
      %p111 = scmp.eq.s32.totalorder %s21, 1
      %p112 = por %p110, %p111
      %p114 = scmp.ne.s32.totalorder %s97, %s113
      %p115 = scmp.eq.s32.totalorder %s21, 0
      %p116 = por %p114, %p115
      %p117 = scmp.le.s32.totalorder 1, %s15
      %p118 = scmp.lt.s32.totalorder %s15, 3
      %p119 = pnand %p117, %p118
      %p120 = pneg %p119
      // Predicated region
      $region9: #{tpu_custom_call.1} parent=5 // pred_check
        _
      $region10: #{tpu_custom_call.1} parent=5 // pred_check_branch
        %122 = sbr.rel (%p119) target = $region12
      $region11: #{tpu_custom_call.1} parent=5 // pred_region
        %s123 = ssub.s32 %s15, 1
        // Predicated region
        $region13: #{tpu_custom_call.1} parent=11 // pred_check
          %p124 = pneg %p62
        $region14: #{tpu_custom_call.1} parent=11 // pred_check_branch
          %126 = sbr.rel (%p124) target = $region16
        $region15: #{tpu_custom_call.1} parent=11 // pred_region
          _
        $region16: #{tpu_custom_call.1} parent=11 // pred_fallthru
          _
        // Predicated region
        $region17: #{tpu_custom_call.1} parent=11 // pred_check
          %p127 = pneg %p83
        $region18: #{tpu_custom_call.1} parent=11 // pred_check_branch
          %129 = sbr.rel (%p127) target = $region20
        $region19: #{tpu_custom_call.1} parent=11 // pred_region
          _
        $region20: #{tpu_custom_call.1} parent=11 // pred_fallthru
          _
      $region12: #{tpu_custom_call.1} parent=5 // pred_fallthru
        _
      %p130 = scmp.lt.s32.totalorder %s15, 2
      // Predicated region
      $region21: #{tpu_custom_call.1} parent=5 // pred_check
        %p131 = pneg %p130
      $region22: #{tpu_custom_call.1} parent=5 // pred_check_branch
        %133 = sbr.rel (%p131) target = $region24
      $region23: #{tpu_custom_call.1} parent=5 // pred_region
        // Predicated region
        $region25: #{tpu_custom_call.1} parent=23 // pred_check
          %p134 = pneg %p35
        $region26: #{tpu_custom_call.1} parent=23 // pred_check_branch
          %136 = sbr.rel (%p134) target = $region28
        $region27: #{tpu_custom_call.1} parent=23 // pred_region
          %s137 = sand.u32 %s25, 1
          %s138 = scalar_lea.sflag [#allocation3], %s137
          %s139 = sand.u32 %s25, 1
          %s140 = smul.addr %s139, 8
          %s141 = scalar_lea.vmem [#allocation2], %s140
          %s143 = ssub.s32 128, 128
          %144 = vsyncadd %s138, %s143
          %s145 = smul.addr %s15, 2
          %s146 = smul.addr %s145, 64
          %s147 = scalar_lea.hbm %s0, %s146
          %s149 = sshll.u32 %s141, 4
          %s150 = int_to_ptr.vmem [resolvable:$true] %s149
          %152 = dma.hbm_to_vmem [thread:$0]  %s147, 128, %s150, %s138
        $region28: #{tpu_custom_call.1} parent=23 // pred_fallthru
          _
      $region24: #{tpu_custom_call.1} parent=5 // pred_fallthru
        _
      %p153 = scmp.le.s32.totalorder 1, %s15
      %p154 = scmp.lt.s32.totalorder %s15, 3
      %p155 = pnand %p153, %p154
      %p156 = pneg %p155
      // Predicated region
      $region29: #{tpu_custom_call.1} parent=5 // pred_check
        _
      $region30: #{tpu_custom_call.1} parent=5 // pred_check_branch
        %158 = sbr.rel (%p155) target = $region32
      $region31: #{tpu_custom_call.1} parent=5 // pred_region
        %s159 = ssub.s32 %s15, 1
        %s160 = sand.u32 %s28, 1
        %s161 = scalar_lea.sflag [#allocation3], %s160
        %s162 = sand.u32 %s28, 1
        %s163 = smul.addr %s162, 8
        %s164 = scalar_lea.vmem [#allocation2], %s163
        // Predicated region
        $region33: #{tpu_custom_call.1} parent=31 // pred_check
          %p165 = pneg %p41
        $region34: #{tpu_custom_call.1} parent=31 // pred_check_branch
          %167 = sbr.rel (%p165) target = $region36
        $region35: #{tpu_custom_call.1} parent=31 // pred_region
          %168 = dma.done %s161, 128
        $region36: #{tpu_custom_call.1} parent=31 // pred_fallthru
          _
        %s169 = sand.u32 %s28, 1
        %s170 = scalar_lea.sflag [#allocation3], %s169
        %s171 = sand.u32 %s28, 1
        %s172 = smul.addr %s171, 8
        %s173 = scalar_lea.vmem [#allocation2], %s172
        %p174 = pneg %p41
        %p175 = pneg %p38
        %p176 = pneg %p62
        %p177 = pneg %p59
        %p178 = pneg %p83
        %p179 = pneg %p80
        %p180 = pneg %p109
        %p181 = pneg %p106
        %s182 = sand.u32 %s96, 1
        %s183 = scalar_lea.sflag [#allocation4], %s182
        %s184 = sand.u32 %s96, 1
        %s185 = smul.addr %s184, 8
        %s186 = scalar_lea.vmem [#allocation5], %s185
        %v187 = vld [vmem:[%s164] sm:$0xff]
        %v189 = vcombine.high %v187, %v187
        %vm191 = vcmask 1043456
        %v192 = vsel %vm191, %v187, 0.0
        %v193 = vsel %vm191, %v189, 0.0
        %v194 = vadd.f32 %v192, %v193
        %195 = vadd.xlane.f32.xlu0 %v194
        %v196 = vpop.xlane.xlu0 %195
        %v197 = vmul.f32 %v196, 0.00390625
        %v198 = vld [vmem:[%s1] sm:$0xf]
        %v199 = vld [vmem:[%s2] sm:$0x3]
        %v201 = vlaneseq
        %v202 = vand.u32 %v201, 127
        %v203 = vlaneseq
        %v204 = vshrl.u32 %v203, 7
        %v205 = vsub.s32 %v202, %v204
        %v206 = vrot.slane %v197, %v205
        %vm207 = vcmask 31744
        %v208 = vsel %vm207, %v206, 0
        %v211 = vsel %vm191, %v198, 0
        %213 = vmatprep.subr.mxu0 0.0
        %214 = vmatpush1.msra.mxu0 %v211
        %215 = vmatprep.subr.mxu0 0.0
        %216 = vmatpush1.msra.mxu0 0.0
        %217 = vmatprep.subr.mxu0 0.0
        %218 = vmatpush1.msra.mxu0 0.0
        %219 = vmatprep.subr.mxu0 0.0
        %220 = vmatpush1.msra.mxu0 0.0
        %221 = vmatprep.subr.mxu0 0.0
        %222 = vmatpush1.msra.mxu0 0.0
        %223 = vmatprep.subr.mxu0 0.0
        %224 = vmatpush1.msra.mxu0 0.0
        %225 = vmatprep.subr.mxu0 0.0
        %226 = vmatpush1.msra.mxu0 0.0
        %227 = vmatprep.subr.mxu0 0.0
        %228 = vmatpush1.msra.mxu0 0.0
        %229 = vmatprep.subr.mxu0 0.0
        %230 = vmatpush1.msra.mxu0 0.0
        %231 = vmatprep.subr.mxu0 0.0
        %232 = vmatpush1.msra.mxu0 0.0
        %233 = vmatprep.subr.mxu0 0.0
        %234 = vmatpush1.msra.mxu0 0.0
        %235 = vmatprep.subr.mxu0 0.0
        %236 = vmatpush1.msra.mxu0 0.0
        %237 = vmatprep.subr.mxu0 0.0
        %238 = vmatpush1.msra.mxu0 0.0
        %239 = vmatprep.subr.mxu0 0.0
        %240 = vmatpush1.msra.mxu0 0.0
        %241 = vmatprep.subr.mxu0 0.0
        %242 = vmatpush1.msra.mxu0 0.0
        %243 = vmatprep.subr.mxu0 0.0
        %244 = vmatpush1.msra.mxu0 0.0
        %245 = vmatprep.subr.mxu0 0.0
        %246 = vmatpush1.msra.mxu0 0.0
        %247 = vmatprep.subr.mxu0 0.0
        %248 = vmatpush1.msra.mxu0 0.0
        %249 = vmatprep.subr.mxu0 0.0
        %250 = vmatpush1.msra.mxu0 0.0
        %251 = vmatprep.subr.mxu0 0.0
        %252 = vmatpush1.msra.mxu0 0.0
        %253 = vmatprep.subr.mxu0 0.0
        %254 = vmatpush1.msra.mxu0 0.0
        %255 = vmatprep.subr.mxu0 0.0
        %256 = vmatpush1.msra.mxu0 0.0
        %257 = vmatprep.subr.mxu0 0.0
        %258 = vmatpush1.msra.mxu0 0.0
        %259 = vmatprep.subr.mxu0 0.0
        %260 = vmatpush1.msra.mxu0 0.0
        %261 = vmatprep.subr.mxu0 0.0
        %262 = vmatpush1.msra.mxu0 0.0
        %263 = vmatprep.subr.mxu0 0.0
        %264 = vmatpush1.msra.mxu0 0.0
        %265 = vmatprep.subr.mxu0 0.0
        %266 = vmatpush1.msra.mxu0 0.0
        %267 = vmatprep.subr.mxu0 0.0
        %268 = vmatpush1.msra.mxu0 0.0
        %269 = vmatprep.subr.mxu0 0.0
        %270 = vmatpush1.msra.mxu0 0.0
        %271 = vmatprep.subr.mxu0 0.0
        %272 = vmatpush1.msra.mxu0 0.0
        %273 = vmatprep.subr.mxu0 0.0
        %274 = vmatpush1.msra.mxu0 0.0
        %275 = vmatprep.subr.mxu0 0.0
        %276 = vmatpush1.msra.mxu0 0.0
        %277 = vmatprep.mubr.f32.mxu0 0.0
        %278 = vmatmul.mubr.f32.gmra.mrb[0].mxu0 %v208
        %v279 = vpop.f32.mrb[0].mxu0
        %v280 = vadd.f32 0.0, %v279
        %v281 = vpop.f32.mrb[0].mxu0
        %282 = vdwg.mxu0
        %v283 = vmax.f32 %v280, 0.0
        %vm284 = vcmask 15360
        %v286 = vsel %vm284, %v283, 0
        %vm288 = vcmask 1041408
        %v290 = vsel %vm288, %v199, 0
        %292 = vmatprep.subr.mxu0 0.0
        %293 = vmatpush1.msra.mxu0 %v290
        %294 = vmatprep.subr.mxu0 0.0
        %295 = vmatpush1.msra.mxu0 0.0
        %296 = vmatprep.subr.mxu0 0.0
        %297 = vmatpush1.msra.mxu0 0.0
        %298 = vmatprep.subr.mxu0 0.0
        %299 = vmatpush1.msra.mxu0 0.0
        %300 = vmatprep.subr.mxu0 0.0
        %301 = vmatpush1.msra.mxu0 0.0
        %302 = vmatprep.subr.mxu0 0.0
        %303 = vmatpush1.msra.mxu0 0.0
        %304 = vmatprep.subr.mxu0 0.0
        %305 = vmatpush1.msra.mxu0 0.0
        %306 = vmatprep.subr.mxu0 0.0
        %307 = vmatpush1.msra.mxu0 0.0
        %308 = vmatprep.subr.mxu0 0.0
        %309 = vmatpush1.msra.mxu0 0.0
        %310 = vmatprep.subr.mxu0 0.0
        %311 = vmatpush1.msra.mxu0 0.0
        %312 = vmatprep.subr.mxu0 0.0
        %313 = vmatpush1.msra.mxu0 0.0
        %314 = vmatprep.subr.mxu0 0.0
        %315 = vmatpush1.msra.mxu0 0.0
        %316 = vmatprep.subr.mxu0 0.0
        %317 = vmatpush1.msra.mxu0 0.0
        %318 = vmatprep.subr.mxu0 0.0
        %319 = vmatpush1.msra.mxu0 0.0
        %320 = vmatprep.subr.mxu0 0.0
        %321 = vmatpush1.msra.mxu0 0.0
        %322 = vmatprep.subr.mxu0 0.0
        %323 = vmatpush1.msra.mxu0 0.0
        %324 = vmatprep.subr.mxu0 0.0
        %325 = vmatpush1.msra.mxu0 0.0
        %326 = vmatprep.subr.mxu0 0.0
        %327 = vmatpush1.msra.mxu0 0.0
        %328 = vmatprep.subr.mxu0 0.0
        %329 = vmatpush1.msra.mxu0 0.0
        %330 = vmatprep.subr.mxu0 0.0
        %331 = vmatpush1.msra.mxu0 0.0
        %332 = vmatprep.subr.mxu0 0.0
        %333 = vmatpush1.msra.mxu0 0.0
        %334 = vmatprep.subr.mxu0 0.0
        %335 = vmatpush1.msra.mxu0 0.0
        %336 = vmatprep.subr.mxu0 0.0
        %337 = vmatpush1.msra.mxu0 0.0
        %338 = vmatprep.subr.mxu0 0.0
        %339 = vmatpush1.msra.mxu0 0.0
        %340 = vmatprep.subr.mxu0 0.0
        %341 = vmatpush1.msra.mxu0 0.0
        %342 = vmatprep.subr.mxu0 0.0
        %343 = vmatpush1.msra.mxu0 0.0
        %344 = vmatprep.subr.mxu0 0.0
        %345 = vmatpush1.msra.mxu0 0.0
        %346 = vmatprep.subr.mxu0 0.0
        %347 = vmatpush1.msra.mxu0 0.0
        %348 = vmatprep.subr.mxu0 0.0
        %349 = vmatpush1.msra.mxu0 0.0
        %350 = vmatprep.subr.mxu0 0.0
        %351 = vmatpush1.msra.mxu0 0.0
        %352 = vmatprep.subr.mxu0 0.0
        %353 = vmatpush1.msra.mxu0 0.0
        %354 = vmatprep.subr.mxu0 0.0
        %355 = vmatpush1.msra.mxu0 0.0
        %356 = vmatprep.mubr.f32.mxu0 0.0
        %357 = vmatmul.mubr.f32.gmra.mrb[0].mxu0 %v286
        %v358 = vpop.f32.mrb[0].mxu0
        %v359 = vadd.f32 0.0, %v358
        %v360 = vpop.f32.mrb[0].mxu0
        %361 = vdwg.mxu0
        %v362 = vxor.u32 %v359, 2147483648
        %v363 = vmul.f32 %v362, 1.442695
        %v364 = vpow.pop %v363
        %v365 = vadd.f32 %v364, 1.0
        %v366 = vrcp.pop %v365
        %v367 = vmul.f32 1.0, %v366
        %v368 = vlaneseq
        %v369 = vshrl.u32 %v368, 7
        %v370 = vsub.s32 0, %v369
        %v371 = vrot.slane %v367, %v370
        %373 = vbcast.lane.b32.xlu0 %v371, 256
        %v374 = vpop.permute.xlu0 %373
        %v377 = vunpack.c.l.s4 839922192
        %v378 = vunpack.c.0.s8 %v377
        %v379 = vlaneseq
        %v380 = vshrl.u32 %v379, 7
        %v381 = vsub.s32 %v378, %v380
        %v382 = vrot.slane %v374, %v381
        %v384 = vmul.f32 %v187, %v382
        %385 = vst [vmem:[%s186] sm:$0xff] %v384
        %s386 = sand.u32 %s96, 1
        %s387 = scalar_lea.sflag [#allocation4], %s386
        %s388 = sand.u32 %s96, 1
        %s389 = smul.addr %s388, 8
        %s390 = scalar_lea.vmem [#allocation5], %s389
        // Predicated region
        $region37: #{tpu_custom_call.1} parent=31 // pred_check
          %p391 = pneg %p106
        $region38: #{tpu_custom_call.1} parent=31 // pred_check_branch
          %393 = sbr.rel (%p391) target = $region40
        $region39: #{tpu_custom_call.1} parent=31 // pred_region
          %s395 = ssub.s32 128, 128
          %396 = vsyncadd %s387, %s395
          %s397 = smul.addr %s20, 2
          %s398 = smul.addr %s397, 64
          %s399 = scalar_lea.hbm %s3, %s398
          %s401 = sshll.u32 %s390, 4
          %s402 = int_to_ptr.vmem [resolvable:$true] %s401
          %404 = dma.vmem_to_hbm [thread:$0]  %s402, 128, %s399, %s387
        $region40: #{tpu_custom_call.1} parent=31 // pred_fallthru
          _
      $region32: #{tpu_custom_call.1} parent=5 // pred_fallthru
        _
      %p405 = scmp.le.s32.totalorder 2, %s15
      // Predicated region
      $region41: #{tpu_custom_call.1} parent=5 // pred_check
        %p406 = pneg %p405
      $region42: #{tpu_custom_call.1} parent=5 // pred_check_branch
        %408 = sbr.rel (%p406) target = $region44
      $region43: #{tpu_custom_call.1} parent=5 // pred_region
        %s409 = ssub.s32 %s15, 2
        // Predicated region
        $region45: #{tpu_custom_call.1} parent=43 // pred_check
          %p410 = pneg %p112
        $region46: #{tpu_custom_call.1} parent=43 // pred_check_branch
          %412 = sbr.rel (%p410) target = $region48
        $region47: #{tpu_custom_call.1} parent=43 // pred_region
          %s413 = sand.u32 %s97, 1
          %s414 = scalar_lea.sflag [#allocation4], %s413
          %s415 = sand.u32 %s97, 1
          %s416 = smul.addr %s415, 8
          %s417 = scalar_lea.vmem [#allocation5], %s416
          %418 = dma.done %s414, 128
        $region48: #{tpu_custom_call.1} parent=43 // pred_fallthru
          _
      $region44: #{tpu_custom_call.1} parent=5 // pred_fallthru
        _
    $region6: #{tpu_custom_call.1} parent=1 // loop_footer
      %s19 = sadd.s32 1, %s15
    $region7: #{tpu_custom_call.1} parent=1 // loop_footer_branch
      %14 = sbr.rel target = $region3
    $region8: #{tpu_custom_call.1} parent=1 // loop_exit
      _
    %419 = vsyncpa [#allocation3], 1
    %s420 = scalar_lea.sflag [#allocation3], 1
    %421 = vsyncpa %s420, 1
    %422 = vsyncpa [#allocation4], 1
    %s423 = scalar_lea.sflag [#allocation4], 1
    %424 = vsyncpa %s423, 1

</llo_original>
